<compile_context>
chip_gen: v7x
topology: tpu7x:2x2x1
jax: 0.10.0
libtpu: 0.0.40
codegen_flags: <defaults>
</compile_context>

<pallas_src>
import jax
import jax.numpy as jnp
from jax.experimental import pallas as pl
from jax.experimental.pallas import tpu as pltpu


def _aliased_noop_kernel(rep_hbm, out_hbm, flag_smem):
    # The output buffer is aliased to the input buffer (input_output_aliases),
    # so the data is already in place: nothing to move, no VMEM, no DMA, no
    # TensorCore slots.  The SMEM write just keeps the kernel body non-empty.
    del rep_hbm, out_hbm
    flag_smem[0] = jnp.int32(1)


def _make_dma_copy_kernel(chunks):
    """HBM->HBM memcpy kernel with all chunk DMAs issued before any wait."""

    def kernel(rep_hbm, out_hbm, sems):
        copies = []
        for i, (start, size) in enumerate(chunks):
            cp = pltpu.make_async_copy(
                rep_hbm.at[pl.ds(start, size)],
                out_hbm.at[pl.ds(start, size)],
                sems.at[i],
            )
            cp.start()
            copies.append(cp)
        for cp in copies:
            cp.wait()

    return kernel


def _chunk_leading_dim(leading, max_chunks=4):
    n = max(1, min(max_chunks, leading))
    base, rem = divmod(leading, n)
    chunks, start = [], 0
    for i in range(n):
        size = base + (1 if i < rem else 0)
        if size > 0:
            chunks.append((start, size))
            start += size
    return chunks


def replace_forward(x, replace_input, *, materialize=False):
    """Forward of Replace: returns replace_input (input is ignored)."""
    rep = replace_input
    assert x.shape == rep.shape and x.dtype == rep.dtype

    if not materialize:
        # Zero-copy pass-through: output aliases the input buffer.
        return pl.pallas_call(
            _aliased_noop_kernel,
            out_shape=jax.ShapeDtypeStruct(rep.shape, rep.dtype),
            in_specs=[pl.BlockSpec(memory_space=pl.ANY)],
            out_specs=pl.BlockSpec(memory_space=pl.ANY),
            scratch_shapes=[pltpu.SMEM((1,), jnp.int32)],
            input_output_aliases={0: 0},
        )(rep)

    # Materializing path: explicit fresh output buffer filled by HBM->HBM DMA.
    rep2 = rep if rep.ndim >= 1 else rep.reshape(1)
    if rep2.ndim >= 3:
        # Leading dim is a pure batch/stride dim (not part of the (8,128)
        # tiled minor pair), so chunk boundaries never split a tile.
        chunks = _chunk_leading_dim(rep2.shape[0])
    else:
        # 1-D / 2-D: a single whole-array DMA is always tile-safe.
        chunks = [(0, rep2.shape[0])]

    out = pl.pallas_call(
        _make_dma_copy_kernel(chunks),
        out_shape=jax.ShapeDtypeStruct(rep2.shape, rep2.dtype),
        in_specs=[pl.BlockSpec(memory_space=pl.ANY)],
        out_specs=pl.BlockSpec(memory_space=pl.ANY),
        scratch_shapes=[pltpu.SemaphoreType.DMA((len(chunks),))],
    )(rep2)
    return out.reshape(rep.shape)


if __name__ == "__main__":
    key = jax.random.PRNGKey(0)
    k1, k2 = jax.random.split(key)
    N, C, H, W = 2, 4, 16, 16
    x = jax.random.normal(k1, (N, C, H, W), dtype=jnp.float32)
    replace_input = jax.random.normal(k2, (N, C, H, W), dtype=jnp.float32)

    # Default (aliased, zero-copy) path.
    out_alias = jax.block_until_ready(replace_forward(x, replace_input))
    # Explicitly materialized path (HBM->HBM DMA into a fresh buffer).
    out_copy = jax.block_until_ready(
        replace_forward(x, replace_input, materialize=True)
    )

    # Forward must equal replace_input exactly.
    assert out_alias.shape == replace_input.shape
    assert out_alias.dtype == replace_input.dtype
    assert jnp.array_equal(out_alias, replace_input)
    assert out_copy.shape == replace_input.shape
    assert out_copy.dtype == replace_input.dtype
    assert jnp.array_equal(out_copy, replace_input)
    print("KERNEL_OK")
</pallas_src>

<mosaic_0001>
module attributes {stable_mosaic.version = 11 : i64} {
  func.func @_aliased_noop_kernel(%arg0: memref<2x4x16x16xf32, #tpu.memory_space<any>>, %arg1: memref<2x4x16x16xf32, #tpu.memory_space<any>>, %arg2: memref<1xi32, #tpu.memory_space<smem>>) attributes {dimension_semantics = [], scalar_prefetch = 0 : i64, scratch_operands = 1 : i64, tpu.core_type = #tpu.core_type<tc>} {
    %c1_i32 = arith.constant 1 : i32
    %c0 = arith.constant 0 : index
    %0 = memref.load %arg2[%c0] : memref<1xi32, #tpu.memory_space<smem>>
    memref.store %c1_i32, %arg2[%c0] : memref<1xi32, #tpu.memory_space<smem>>
    return
  }
}

</mosaic_0001>

<llo_original>
// kernel: tpu_custom_call.1
$region0: #{tpu_custom_call.1}
  #allocation0 [shape = 'u32[]', space=smem, size = 0x4, offset = 0x4, fixed_abs, tag = 'smem constant byte address 0x4 - core index']
  #allocation1 [shape = 'u32[144,128]{1,0:T(1,128)}', space=vmem, size = 0x12000, scoped, tag = 'internal scratch']
  #allocation2 [shape = 's32[1]{0:T(128)}', space=smem, size = 0x200, scoped, tag = 'scratch operand']
  %s0 = inlined_call_operand.hbm [shape: f32[2,4,16,16], index: 0, kind: input, shape index: {}, may-alias: {0,1}]
  %s1 = inlined_call_operand.hbm [shape: f32[2,4,16,16], index: 1, kind: output, shape index: {}, may-alias: {0,1}]
  %s2 = sld [smem:[#allocation0]]
  $region2: #{tpu_custom_call.1} parent=0
    _
  %s4 = ssub.s32 1, %s2
  %s5 = scalar_select 0, %s4, %s2
  %s6 = scalar_lea.smem [#allocation2], 0
  %7 = sst [smem:[%s6]] 1

</llo_original>
